<compile_context>
chip_gen: v7x
topology: tpu7x:2x2x1
jax: 0.10.0
libtpu: 0.0.40
codegen_flags: <defaults>
</compile_context>

<pallas_src>
import math
import random

import jax
import jax.numpy as jnp
from jax.experimental import pallas as pl
from jax.experimental.pallas import tpu as pltpu

IMAGENET_DEFAULT_MEAN = (0.485, 0.456, 0.406)
IMAGENET_DEFAULT_STD = (0.229, 0.224, 0.225)
IMAGE_TASKS = ("rgb", "depth", "semseg", "semseg_coco")


# ---------------------------------------------------------------------------
# Pallas kernel: fused crop/resize/flip (two MXU contractions) + affine
# ---------------------------------------------------------------------------
def _crop_resize_norm_kernel(scale_ref, bias_ref, x_ref, wxT_ref, wyb_ref, o_ref):
    # x_ref  : (tT*H, W)       raw source rows (uint8 rgb / f32 or uint16 depth)
    # wxT_ref: (W, outS)       compute-dtype, resident across grid steps
    # wyb_ref: (tT, outS, H)   compute-dtype, resident (identical slices along t)
    # o_ref  : (tT, outS, outS) output dtype (bf16 rgb / f32 depth)
    c = pl.program_id(1)
    s = scale_ref[c]                    # per-channel scale (SMEM scalar)
    b = bias_ref[c]                     # per-channel bias  (SMEM scalar)

    cd = wxT_ref.dtype                  # compute dtype (bf16 for rgb, f32 for depth)
    tT, outS, H = wyb_ref.shape

    # Source cast.  Integer sources go via f32 (well-supported lowering path);
    # the elementwise convert chain is fused per-vreg by Mosaic, so no
    # full-frame f32 temporary survives in VMEM.
    if jnp.issubdtype(x_ref.dtype, jnp.integer):
        x = x_ref[...].astype(jnp.float32).astype(cd)
    else:
        x = x_ref[...].astype(cd)

    # Fold the per-channel normalization scale into the tiny Wx^T weights
    # (exact: the resample is linear and rows of Wy/Wx sum to 1).
    wx = (wxT_ref[...] * s).astype(cd)                              # (W, outS)

    # 1) W-contraction for all frames at once: (tT*H, W) @ (W, outS)   [MXU]
    tmp = jnp.dot(x, wx, preferred_element_type=jnp.float32)        # (tT*H, outS)
    tmp = tmp.astype(cd).reshape(tT, H, outS)

    # 2) H-contraction batched over frames: (tT,outS,H) x (tT,H,outS)  [MXU]
    res = jax.lax.dot_general(
        wyb_ref[...], tmp,
        dimension_numbers=(((2,), (1,)), ((0,), (0,))),
        preferred_element_type=jnp.float32)                         # (tT, outS, outS)

    # Per-channel bias on the small output tile; single dense block store.
    o_ref[...] = (res + b).astype(o_ref.dtype)


def _vmem_footprint(tT, H, W, outS, in_item, cd_item, out_item):
    """Approximate per-step VMEM bytes (double-buffered blocks + resident
    weights + in-kernel temporaries)."""
    in_blk = tT * H * W * in_item
    out_blk = tT * outS * outS * out_item
    wxt = W * outS * cd_item
    wyb = tT * outS * H * cd_item
    temps = (tT * H * W * (4 + cd_item)          # cast chain + compute-dtype x
             + tT * H * outS * (4 + cd_item)     # f32 matmul1 result + cd copy
             + tT * outS * outS * 4              # f32 matmul2 result
             + W * outS * (4 + cd_item))         # scaled Wx^T
    return 2 * (in_blk + out_blk) + 2 * (wxt + wyb) + temps


def crop_resize_normalize(x, scale, bias, wy, wxT, out_dtype,
                          compute_dtype=jnp.bfloat16, vmem_budget=40 << 20):
    """x: (B, C, T, H, W) raw dtype; scale, bias: (C,) f32;
    wy: (outS, H) f32; wxT: (W, outS) f32."""
    B, C, T, H, W = x.shape
    outS = wy.shape[0]
    cd = jnp.dtype(compute_dtype)
    out_dt = jnp.dtype(out_dtype)

    # Largest T tile (divisor of T) whose footprint fits the VMEM budget
    # (v7x has only 64 MiB/TC; smaller tiles also add grid parallelism there).
    tT = 1
    for cand in range(T, 0, -1):
        if T % cand == 0 and _vmem_footprint(
                cand, H, W, outS, x.dtype.itemsize, cd.itemsize,
                out_dt.itemsize) <= vmem_budget:
            tT = cand
            break
    nT = T // tT

    footprint = _vmem_footprint(tT, H, W, outS, x.dtype.itemsize,
                                cd.itemsize, out_dt.itemsize)
    vmem_limit = int(min(max(footprint * 5 // 4 + (2 << 20), 8 << 20), 100 << 20))

    # Flatten (T, H) in the wrapper so the DMA'd block already has the layout
    # the first matmul wants (free metadata change on the channels-first array).
    x_flat = x.reshape(B, C, T * H, W)
    wxT_cd = wxT.astype(cd)
    wyb = jnp.broadcast_to(wy.astype(cd)[None], (tT, outS, H))

    return pl.pallas_call(
        _crop_resize_norm_kernel,
        out_shape=jax.ShapeDtypeStruct((B, C, T, outS, outS), out_dt),
        grid=(B, C, nT),
        in_specs=[
            pl.BlockSpec(memory_space=pltpu.MemorySpace.SMEM),                 # scale (C,)
            pl.BlockSpec(memory_space=pltpu.MemorySpace.SMEM),                 # bias  (C,)
            pl.BlockSpec((None, None, tT * H, W), lambda b, c, t: (b, c, t, 0)),  # x rows
            pl.BlockSpec((W, outS), lambda b, c, t: (0, 0)),                   # Wx^T resident
            pl.BlockSpec((tT, outS, H), lambda b, c, t: (0, 0, 0)),            # Wy   resident
        ],
        out_specs=pl.BlockSpec((None, None, tT, outS, outS),
                               lambda b, c, t: (b, c, t, 0, 0)),
        compiler_params=pltpu.CompilerParams(
            dimension_semantics=("parallel", "parallel", "parallel"),
            vmem_limit_bytes=vmem_limit),
    )(scale, bias, x_flat, wxT_cd, wyb)


# ---------------------------------------------------------------------------
# Glue: interpolation matrices (crop + bilinear resize + optional hflip)
# ---------------------------------------------------------------------------
def _interp_matrix(out_size, crop_start, crop_len, full_len, flip=False):
    """(out_size, full_len) f32 matrix fusing crop and half-pixel bilinear
    resize (align_corners=False); rows sum to 1.  Optionally row-reversed for
    hflip (hflip is applied to the resized output, matching the module)."""
    o = jnp.arange(out_size, dtype=jnp.float32)
    src = (o + 0.5) * (crop_len / out_size) - 0.5
    src = jnp.clip(src, 0.0, float(crop_len - 1))
    v0 = jnp.floor(src)
    w1 = src - v0
    w0 = 1.0 - w1
    i0 = v0.astype(jnp.int32) + crop_start
    i1 = jnp.minimum(v0.astype(jnp.int32) + 1, crop_len - 1) + crop_start
    eye = jnp.eye(full_len, dtype=jnp.float32)
    W = w0[:, None] * eye[i0] + w1[:, None] * eye[i1]
    if flip:
        W = W[::-1, :]
    return W


class HabitatVideoTransformPallas:
    """JAX/Pallas port of HabitatVideoTransform (handles 'rgb' and 'depth')."""

    def __init__(self, input_size: int, hflip: float,
                 rgb_out_dtype=jnp.bfloat16, depth_out_dtype=jnp.float32) -> None:
        # rgb defaults to bf16 output (source is 8-bit; downstream patch-embed
        # matmuls run in bf16 anyway) -> halves the dominant HBM write traffic.
        # depth stays f32 end-to-end to preserve metric precision.
        self.rgb_mean = jnp.asarray(IMAGENET_DEFAULT_MEAN, jnp.float32)
        self.rgb_std = jnp.asarray(IMAGENET_DEFAULT_STD, jnp.float32)
        self.input_size = input_size
        self.hflip = hflip
        self.rgb_out_dtype = rgb_out_dtype
        self.depth_out_dtype = depth_out_dtype

    def _get_crop_params(self, rng, H, W):
        # Deterministic (seeded host RNG) stand-in for RandomResizedCrop.get_params
        # with scale=(0.2, 1.0), ratio=(0.75, 1.3333); not bit-identical to torch RNG.
        area = H * W
        for _ in range(10):
            target_area = area * rng.uniform(0.2, 1.0)
            ar = math.exp(rng.uniform(math.log(0.75), math.log(4.0 / 3.0)))
            w = int(round(math.sqrt(target_area * ar)))
            h = int(round(math.sqrt(target_area / ar)))
            if 0 < w <= W and 0 < h <= H:
                i = rng.randint(0, H - h)
                j = rng.randint(0, W - w)
                return i, j, h, w
        return 0, 0, H, W

    def __call__(self, task_dict, seed: int = 0, check: bool = False):
        rng = random.Random(seed)
        flip = rng.random() < self.hflip

        prepared = {}
        for task, x in task_dict.items():
            if task == "depth":
                # Depth is accepted in its stored dtype (f32 or uint16); the
                # /2**16 scale is applied post-matmul, cast happens on-chip.
                # TODO(synk): producers that already emit channels-first
                # (b,c,t,h,w) would skip this XLA transpose pass entirely.
                img = jnp.transpose(x, (0, 4, 1, 2, 3))
                C = img.shape[1]
                scale = jnp.full((C,), 1.0 / 2 ** 16, jnp.float32)
                bias = jnp.zeros((C,), jnp.float32)
                prepared[task] = (img, scale, bias, jnp.float32, self.depth_out_dtype)
            elif task == "rgb":
                img = jnp.transpose(x, (0, 4, 1, 2, 3))   # stays uint8: 4x less HBM read
                scale = (1.0 / (255.0 * self.rgb_std)).astype(jnp.float32)
                bias = (-self.rgb_mean / self.rgb_std).astype(jnp.float32)
                prepared[task] = (img, scale, bias, jnp.bfloat16, self.rgb_out_dtype)
            else:
                # TODO(synk): 'semseg'/'semseg_coco' branch relies on PIL-style
                # .resize + long cast; no clean Pallas equivalent — passed through.
                prepared[task] = None

        out = dict(task_dict)
        ijhw = None
        for task, prep in prepared.items():
            if prep is None or task not in IMAGE_TASKS:
                continue
            img, scale, bias, cd, od = prep
            B, C, T, H, W = img.shape
            if ijhw is None:
                ijhw = self._get_crop_params(rng, H, W)
            i, j, h, w = ijhw
            wy = _interp_matrix(self.input_size, i, h, H, flip=False)
            wx = _interp_matrix(self.input_size, j, w, W, flip=flip)
            res = crop_resize_normalize(img, scale, bias, wy, wx.T,
                                        out_dtype=od, compute_dtype=cd)
            if check:
                xn = img.astype(jnp.float32)
                ref = jnp.einsum("oh,bcthw,pw->bctop", wy, xn, wx)
                ref = ref * scale.reshape(1, C, 1, 1, 1) + bias.reshape(1, C, 1, 1, 1)
                bf16_path = (jnp.dtype(cd) == jnp.bfloat16
                             or jnp.dtype(od) == jnp.bfloat16)
                tol = 7.5e-2 if bf16_path else 1e-4
                assert jnp.allclose(res.astype(jnp.float32), ref,
                                    atol=tol, rtol=tol), task
            out[task] = res
        return out


if __name__ == "__main__":
    key = jax.random.PRNGKey(0)
    k1, k2 = jax.random.split(key)

    B, T, H, W = 2, 4, 16, 16
    input_size = 8

    rgb = jax.random.randint(k1, (B, T, H, W, 3), 0, 256, dtype=jnp.int32).astype(jnp.uint8)
    depth = jax.random.uniform(k2, (B, T, H, W, 1), dtype=jnp.float32) * 65535.0

    tfm = HabitatVideoTransformPallas(input_size=input_size, hflip=0.5)
    out = tfm({"rgb": rgb, "depth": depth}, seed=0, check=True)

    jax.block_until_ready((out["rgb"], out["depth"]))
    assert out["rgb"].shape == (B, 3, T, input_size, input_size)
    assert out["rgb"].dtype == jnp.bfloat16
    assert out["depth"].shape == (B, 1, T, input_size, input_size)
    assert out["depth"].dtype == jnp.float32
    print("KERNEL_OK")
</pallas_src>

<mosaic_0001>
module attributes {stable_mosaic.version = 11 : i64} {
  func.func @_crop_resize_norm_kernel(%arg0: i32, %arg1: i32, %arg2: i32, %arg3: memref<3xf32, #tpu.memory_space<smem>>, %arg4: memref<3xf32, #tpu.memory_space<smem>>, %arg5: memref<1x1x64x16xi8, #tpu.memory_space<vmem>>, %arg6: memref<16x8xbf16, #tpu.memory_space<vmem>>, %arg7: memref<4x8x16xbf16, #tpu.memory_space<vmem>>, %arg8: memref<1x1x4x8x8xbf16, #tpu.memory_space<vmem>>) attributes {dimension_semantics = [#tpu.dimension_semantics<parallel>, #tpu.dimension_semantics<parallel>, #tpu.dimension_semantics<parallel>], iteration_bounds = array<i64: 2, 3, 1>, scalar_prefetch = 0 : i64, scratch_operands = 0 : i64, tpu.core_type = #tpu.core_type<tc>, window_params = [{transform_indices = @transform_0, window_bounds = array<i64: 3>}, {transform_indices = @transform_1, window_bounds = array<i64: 3>}, {transform_indices = @transform_2, window_bounds = array<i64: 1, 1, 64, 16>}, {pipeline_mode = #tpu.pipeline_mode<synchronous>, transform_indices = @transform_3, window_bounds = array<i64: 16, 8>}, {pipeline_mode = #tpu.pipeline_mode<synchronous>, transform_indices = @transform_4, window_bounds = array<i64: 4, 8, 16>}, {transform_indices = @transform_5, window_bounds = array<i64: 1, 1, 4, 8, 8>}]} {
    %0 = arith.index_cast %arg1 : i32 to index
    %1 = memref.load %arg3[%0] : memref<3xf32, #tpu.memory_space<smem>>
    %2 = arith.index_cast %arg1 : i32 to index
    %3 = memref.load %arg4[%2] : memref<3xf32, #tpu.memory_space<smem>>
    %c0 = arith.constant 0 : index
    %c0_0 = arith.constant 0 : index
    %c0_1 = arith.constant 0 : index
    %c0_2 = arith.constant 0 : index
    %4 = vector.load %arg5[%c0, %c0_0, %c0_1, %c0_2] : memref<1x1x64x16xi8, #tpu.memory_space<vmem>>, vector<1x1x64x16xi8>
    %5 = vector.shape_cast %4 : vector<1x1x64x16xi8> to vector<64x16xi8>
    %6 = arith.uitofp %5 : vector<64x16xi8> to vector<64x16xf32>
    %7 = arith.truncf %6 : vector<64x16xf32> to vector<64x16xbf16>
    %c0_3 = arith.constant 0 : index
    %c0_4 = arith.constant 0 : index
    %8 = vector.load %arg6[%c0_3, %c0_4] : memref<16x8xbf16, #tpu.memory_space<vmem>>, vector<16x8xbf16>
    %9 = arith.extf %8 : vector<16x8xbf16> to vector<16x8xf32>
    %10 = vector.broadcast %1 : f32 to vector<16x8xf32>
    %11 = arith.mulf %9, %10 : vector<16x8xf32>
    %12 = arith.truncf %11 : vector<16x8xf32> to vector<16x8xbf16>
    %cst = arith.constant dense<0.000000e+00> : vector<64x8xf32>
    %13 = tpu.matmul %7, %12, %cst {dimension_numbers = #tpu.dot_dimension_numbers<[1], [0], [0], [1], [0, 0, 1, 1], [], []>} : vector<64x16xbf16>, vector<16x8xbf16>, vector<64x8xf32> -> vector<64x8xf32>
    %14 = arith.truncf %13 : vector<64x8xf32> to vector<64x8xbf16>
    %15 = vector.shape_cast %14 : vector<64x8xbf16> to vector<4x16x8xbf16>
    %c0_5 = arith.constant 0 : index
    %c0_6 = arith.constant 0 : index
    %c0_7 = arith.constant 0 : index
    %16 = vector.load %arg7[%c0_5, %c0_6, %c0_7] : memref<4x8x16xbf16, #tpu.memory_space<vmem>>, vector<4x8x16xbf16>
    %cst_8 = arith.constant dense<0.000000e+00> : vector<4x8x8xf32>
    %17 = tpu.matmul %16, %15, %cst_8 {dimension_numbers = #tpu.dot_dimension_numbers<[2], [1], [1], [2], [0, 0, 0, 1, 1, 2], [0], [0]>} : vector<4x8x16xbf16>, vector<4x16x8xbf16>, vector<4x8x8xf32> -> vector<4x8x8xf32>
    %18 = vector.broadcast %3 : f32 to vector<4x8x8xf32>
    %19 = arith.addf %17, %18 : vector<4x8x8xf32>
    %20 = arith.truncf %19 : vector<4x8x8xf32> to vector<4x8x8xbf16>
    %c0_9 = arith.constant 0 : index
    %c0_10 = arith.constant 0 : index
    %c0_11 = arith.constant 0 : index
    %c0_12 = arith.constant 0 : index
    %c0_13 = arith.constant 0 : index
    %21 = vector.load %arg8[%c0_9, %c0_10, %c0_11, %c0_12, %c0_13] : memref<1x1x4x8x8xbf16, #tpu.memory_space<vmem>>, vector<1x1x4x8x8xbf16>
    %22 = vector.shape_cast %21 : vector<1x1x4x8x8xbf16> to vector<4x8x8xbf16>
    %23 = vector.shape_cast %20 : vector<4x8x8xbf16> to vector<1x1x4x8x8xbf16>
    tpu.vector_store %arg8[%c0_9, %c0_10, %c0_11, %c0_12, %c0_13], %23 {strides = array<i32>} : memref<1x1x4x8x8xbf16, #tpu.memory_space<vmem>>, vector<1x1x4x8x8xbf16>,
    return
  }
  func.func @transform_0(%arg0: i32, %arg1: i32, %arg2: i32) -> i32 {
    %c0_i32 = arith.constant 0 : i32
    %c0_i32_0 = arith.constant 0 : i32
    return %c0_i32 : i32
  }
  func.func @transform_1(%arg0: i32, %arg1: i32, %arg2: i32) -> i32 {
    %c0_i32 = arith.constant 0 : i32
    %c0_i32_0 = arith.constant 0 : i32
    return %c0_i32 : i32
  }
  func.func @transform_2(%arg0: i32, %arg1: i32, %arg2: i32) -> (i32, i32, i32, i32) {
    %c0_i32 = arith.constant 0 : i32
    %c0_i32_0 = arith.constant 0 : i32
    return %arg0, %arg1, %arg2, %c0_i32 : i32, i32, i32, i32
  }
  func.func @transform_3(%arg0: i32, %arg1: i32, %arg2: i32) -> (i32, i32) {
    %c0_i32 = arith.constant 0 : i32
    %c0_i32_0 = arith.constant 0 : i32
    %c0_i32_1 = arith.constant 0 : i32
    return %c0_i32, %c0_i32_0 : i32, i32
  }
  func.func @transform_4(%arg0: i32, %arg1: i32, %arg2: i32) -> (i32, i32, i32) {
    %c0_i32 = arith.constant 0 : i32
    %c0_i32_0 = arith.constant 0 : i32
    %c0_i32_1 = arith.constant 0 : i32
    %c0_i32_2 = arith.constant 0 : i32
    return %c0_i32, %c0_i32_0, %c0_i32_1 : i32, i32, i32
  }
  func.func @transform_5(%arg0: i32, %arg1: i32, %arg2: i32) -> (i32, i32, i32, i32, i32) {
    %c0_i32 = arith.constant 0 : i32
    %c0_i32_0 = arith.constant 0 : i32
    %c0_i32_1 = arith.constant 0 : i32
    return %arg0, %arg1, %arg2, %c0_i32, %c0_i32_0 : i32, i32, i32, i32, i32
  }
}

</mosaic_0001>

<llo_original>
// kernel: tpu_custom_call.1
$region0: #{tpu_custom_call.1}
  #allocation0 [shape = 'u32[]', space=smem, size = 0x4, offset = 0x4, fixed_abs, tag = 'smem constant byte address 0x4 - core index']
  #allocation1 [shape = 'u32[144,128]{1,0:T(1,128)}', space=vmem, size = 0x12000, scoped, tag = 'internal scratch']
  %s0 = inlined_call_operand.vmem [shape: f32[3], index: 0, kind: input, shape index: {}]
  %s1 = inlined_call_operand.vmem [shape: f32[3], index: 1, kind: input, shape index: {}]
  %s2 = inlined_call_operand.vmem [shape: u8[2,3,64,16], index: 2, kind: input, shape index: {}]
  %s3 = inlined_call_operand.vmem [shape: bf16[16,8], index: 3, kind: input, shape index: {}]
  %s4 = inlined_call_operand.vmem [shape: bf16[4,8,16], index: 4, kind: input, shape index: {}]
  %s5 = inlined_call_operand.hbm [shape: bf16[2,3,4,8,8], index: 5, kind: output, shape index: {}]
  %s6 = sld [smem:[#allocation0]]
  $region61: #{tpu_custom_call.1} parent=0
    _
  %s8 = ssub.s32 1, %s6
  %s9 = scalar_select 0, %s8, %s6
  $region1: #{tpu_custom_call.1} parent=0
    #allocation2 [shape = 'u8[512]{0}', space=smem, size = 0x200, scoped, tag = 'input window, operand 0, single buffered']
    #allocation3 [shape = 's32[2]{0}', space=sflag, size = 0x8, scoped, tag = 'scoped memory for tpu_custom_call.1']
    #allocation4 [shape = 's32[2]{0}', space=sflag, size = 0x8, scoped, tag = 'scoped memory for tpu_custom_call.1']
    #allocation5 [shape = 'u8[512]{0}', space=smem, size = 0x200, scoped, tag = 'input window, operand 1, single buffered']
    #allocation6 [shape = 's32[1]{0}', space=sflag, size = 0x4, scoped, tag = 'scoped memory for tpu_custom_call.1']
    #allocation7 [shape = 'u8[16384]{0}', space=vmem, size = 0x4000, scoped, tag = 'output window, operand 0']
    %10 = vsyncpa [#allocation4], 0
    %11 = vsyncpa [#allocation6], 0
    %12 = vsyncpa [#allocation3], 0
    %s13 = scalar_lea.sflag [#allocation3], 1
    %14 = vsyncpa %s13, 0
    loop: start=0, step=1, limit=8
    $region2: #{tpu_custom_call.1} parent=1 // loop_pre_header
      _
    $region3: #{tpu_custom_call.1} parent=1 // loop_header
      %s16 = sphi 0, %s20
      %p17 = scmp.ge.s32.totalorder %s16, 8
      %s23 = sphi 0, %s42
      %s24 = sphi 0, %s38
      %s25 = sphi 0, %s34
      %s26 = sphi 0, %s23
      %s27 = sphi 0, %s24
      %s28 = sphi 0, %s25
      %s29 = sphi 0, %s26
      %s30 = sphi 0, %s27
      %s31 = sphi 0, %s28
      %s43 = sphi 0, %s43
      %s45 = sphi 0, %s43
      %s46 = sphi 0, %s45
      %s60 = sphi 0, %s46
      %s64 = sphi 0, %s64
      %s66 = sphi 0, %s64
      %s67 = sphi 0, %s66
      %s81 = sphi 0, %s67
      %s91 = sphi 0, %s93
      %s94 = sphi 0, %s91
      %s95 = sphi 0, %s94
      %s111 = sphi 0, %s95
      %s115 = sphi 0, %s115
      %s117 = sphi 0, %s115
      %s118 = sphi 0, %s117
      %s132 = sphi 0, %s118
      %s136 = sphi 0, %s136
      %s138 = sphi 0, %s136
      %s139 = sphi 0, %s138
      %s153 = sphi 0, %s139
      %s163 = sphi 0, %s165
      %s166 = sphi 0, %s163
      %s167 = sphi 0, %s166
      %s183 = sphi 0, %s167
    $region4: #{tpu_custom_call.1} parent=1 // loop_header_branch
      %19 = sbr.rel (%p17) target = $region8
    $region5: #{tpu_custom_call.1} parent=1 // loop_body
      %s21 = ssub.s32 %s16, 1
      %s22 = ssub.s32 %s16, 2
      %s32 = sadd.s32 1, %s25
      %p33 = scmp.ge.s32.totalorder %s32, 1
      %s34 = scalar_select %p33, 0, %s32
      %s35 = sadd.s32 1, %s24
      %s36 = scalar_select %p33, %s35, %s24
      %p37 = scmp.ge.s32.totalorder %s36, 3
      %s38 = scalar_select %p37, 0, %s36
      %s39 = sadd.s32 1, %s23
      %s40 = scalar_select %p37, %s39, %s23
      %p41 = scmp.ge.s32.totalorder %s40, 2
      %s42 = scalar_select %p41, 0, %s40
      %s44 = sadd.s32 %s43, 1
      %p47 = scmp.eq.s32.totalorder %s16, 5
      %p48 = scmp.ne.s32.totalorder %s43, %s45
      %p49 = scmp.eq.s32.totalorder %s16, 0
      %p50 = por %p48, %p49
      %p51 = scmp.ne.s32.totalorder %s43, %s45
      %p52 = scmp.eq.s32.totalorder %s21, 5
      %p53 = por %p51, %p52
      %p54 = scmp.ne.s32.totalorder %s45, %s46
      %p55 = scmp.eq.s32.totalorder %s21, 0
      %p56 = por %p54, %p55
      %p57 = scmp.ne.s32.totalorder %s45, %s46
      %p58 = scmp.eq.s32.totalorder %s22, 5
      %p59 = por %p57, %p58
      %p61 = scmp.ne.s32.totalorder %s46, %s60
      %p62 = scmp.eq.s32.totalorder %s22, 0
      %p63 = por %p61, %p62
      %s65 = sadd.s32 %s64, 1
      %p68 = scmp.eq.s32.totalorder %s16, 5
      %p69 = scmp.ne.s32.totalorder %s64, %s66
      %p70 = scmp.eq.s32.totalorder %s16, 0
      %p71 = por %p69, %p70
      %p72 = scmp.ne.s32.totalorder %s64, %s66
      %p73 = scmp.eq.s32.totalorder %s21, 5
      %p74 = por %p72, %p73
      %p75 = scmp.ne.s32.totalorder %s66, %s67
      %p76 = scmp.eq.s32.totalorder %s21, 0
      %p77 = por %p75, %p76
      %p78 = scmp.ne.s32.totalorder %s66, %s67
      %p79 = scmp.eq.s32.totalorder %s22, 5
      %p80 = por %p78, %p79
      %p82 = scmp.ne.s32.totalorder %s67, %s81
      %p83 = scmp.eq.s32.totalorder %s22, 0
      %p84 = por %p82, %p83
      %s85 = ssub.s32 %s23, %s42
      %s86 = ssub.s32 %s24, %s38
      %s87 = sor.u32 %s85, %s86
      %s88 = ssub.s32 %s25, %s34
      %s89 = sor.u32 %s87, %s88
      %p90 = scmp.eq.s32.totalorder %s89, 0
      %s92 = sadd.s32 %s91, 1
      %s93 = scalar_select %p90, %s91, %s92
      %p96 = pneg %p90
      %p97 = scmp.eq.s32.totalorder %s16, 5
      %p98 = por %p96, %p97
      %p99 = scmp.ne.s32.totalorder %s91, %s94
      %p100 = scmp.eq.s32.totalorder %s16, 0
      %p101 = por %p99, %p100
      %p102 = scmp.ne.s32.totalorder %s91, %s94
      %p103 = scmp.eq.s32.totalorder %s21, 5
      %p104 = por %p102, %p103
      %p105 = scmp.ne.s32.totalorder %s94, %s95
      %p106 = scmp.eq.s32.totalorder %s21, 0
      %p107 = por %p105, %p106
      %p108 = scmp.ne.s32.totalorder %s94, %s95
      %p109 = scmp.eq.s32.totalorder %s22, 5
      %p110 = por %p108, %p109
      %p112 = scmp.ne.s32.totalorder %s95, %s111
      %p113 = scmp.eq.s32.totalorder %s22, 0
      %p114 = por %p112, %p113
      %s116 = sadd.s32 %s115, 1
      %p119 = scmp.eq.s32.totalorder %s16, 5
      %p120 = scmp.ne.s32.totalorder %s115, %s117
      %p121 = scmp.eq.s32.totalorder %s16, 0
      %p122 = por %p120, %p121
      %p123 = scmp.ne.s32.totalorder %s115, %s117
      %p124 = scmp.eq.s32.totalorder %s21, 5
      %p125 = por %p123, %p124
      %p126 = scmp.ne.s32.totalorder %s117, %s118
      %p127 = scmp.eq.s32.totalorder %s21, 0
      %p128 = por %p126, %p127
      %p129 = scmp.ne.s32.totalorder %s117, %s118
      %p130 = scmp.eq.s32.totalorder %s22, 5
      %p131 = por %p129, %p130
      %p133 = scmp.ne.s32.totalorder %s118, %s132
      %p134 = scmp.eq.s32.totalorder %s22, 0
      %p135 = por %p133, %p134
      %s137 = sadd.s32 %s136, 1
      %p140 = scmp.eq.s32.totalorder %s16, 5
      %p141 = scmp.ne.s32.totalorder %s136, %s138
      %p142 = scmp.eq.s32.totalorder %s16, 0
      %p143 = por %p141, %p142
      %p144 = scmp.ne.s32.totalorder %s136, %s138
      %p145 = scmp.eq.s32.totalorder %s21, 5
      %p146 = por %p144, %p145
      %p147 = scmp.ne.s32.totalorder %s138, %s139
      %p148 = scmp.eq.s32.totalorder %s21, 0
      %p149 = por %p147, %p148
      %p150 = scmp.ne.s32.totalorder %s138, %s139
      %p151 = scmp.eq.s32.totalorder %s22, 5
      %p152 = por %p150, %p151
      %p154 = scmp.ne.s32.totalorder %s139, %s153
      %p155 = scmp.eq.s32.totalorder %s22, 0
      %p156 = por %p154, %p155
      %s157 = ssub.s32 %s23, %s42
      %s158 = ssub.s32 %s24, %s38
      %s159 = sor.u32 %s157, %s158
      %s160 = ssub.s32 %s25, %s34
      %s161 = sor.u32 %s159, %s160
      %p162 = scmp.eq.s32.totalorder %s161, 0
      %s164 = sadd.s32 %s163, 1
      %s165 = scalar_select %p162, %s163, %s164
      %p168 = pneg %p162
      %p169 = scmp.eq.s32.totalorder %s16, 5
      %p170 = por %p168, %p169
      %p171 = scmp.ne.s32.totalorder %s163, %s166
      %p172 = scmp.eq.s32.totalorder %s16, 0
      %p173 = por %p171, %p172
      %p174 = scmp.ne.s32.totalorder %s163, %s166
      %p175 = scmp.eq.s32.totalorder %s21, 5
      %p176 = por %p174, %p175
      %p177 = scmp.ne.s32.totalorder %s166, %s167
      %p178 = scmp.eq.s32.totalorder %s21, 0
      %p179 = por %p177, %p178
      %p180 = scmp.ne.s32.totalorder %s166, %s167
      %p181 = scmp.eq.s32.totalorder %s22, 5
      %p182 = por %p180, %p181
      %p184 = scmp.ne.s32.totalorder %s167, %s183
      %p185 = scmp.eq.s32.totalorder %s22, 0
      %p186 = por %p184, %p185
      %p187 = scmp.le.s32.totalorder 1, %s16
      %p188 = scmp.lt.s32.totalorder %s16, 7
      %p189 = pnand %p187, %p188
      %p190 = pneg %p189
      // Predicated region
      $region9: #{tpu_custom_call.1} parent=5 // pred_check
        _
      $region10: #{tpu_custom_call.1} parent=5 // pred_check_branch
        %192 = sbr.rel (%p189) target = $region12
      $region11: #{tpu_custom_call.1} parent=5 // pred_region
        %s193 = ssub.s32 %s16, 1
        // Predicated region
        $region13: #{tpu_custom_call.1} parent=11 // pred_check
          %p194 = pneg %p56
        $region14: #{tpu_custom_call.1} parent=11 // pred_check_branch
          %196 = sbr.rel (%p194) target = $region16
        $region15: #{tpu_custom_call.1} parent=11 // pred_region
          %s198 = ssub.s32 16, 16
          %199 = vsyncadd [#allocation4], %s198
          %s201 = sshll.u32 %s0, 4
          %s202 = int_to_ptr.vmem [resolvable:$true] %s201
          %204 = dma.vmem_to_smem %s202, 16, [#allocation2], [#allocation4]
        $region16: #{tpu_custom_call.1} parent=11 // pred_fallthru
          _
        // Predicated region
        $region17: #{tpu_custom_call.1} parent=11 // pred_check
          %p205 = pneg %p77
        $region18: #{tpu_custom_call.1} parent=11 // pred_check_branch
          %207 = sbr.rel (%p205) target = $region20
        $region19: #{tpu_custom_call.1} parent=11 // pred_region
          %s209 = ssub.s32 16, 16
          %210 = vsyncadd [#allocation6], %s209
          %s212 = sshll.u32 %s1, 4
          %s213 = int_to_ptr.vmem [resolvable:$true] %s212
          %215 = dma.vmem_to_smem %s213, 16, [#allocation5], [#allocation6]
        $region20: #{tpu_custom_call.1} parent=11 // pred_fallthru
          _
        // Predicated region
        $region21: #{tpu_custom_call.1} parent=11 // pred_check
          %p216 = pneg %p128
        $region22: #{tpu_custom_call.1} parent=11 // pred_check_branch
          %218 = sbr.rel (%p216) target = $region24
        $region23: #{tpu_custom_call.1} parent=11 // pred_region
          _
        $region24: #{tpu_custom_call.1} parent=11 // pred_fallthru
          _
        // Predicated region
        $region25: #{tpu_custom_call.1} parent=11 // pred_check
          %p219 = pneg %p149
        $region26: #{tpu_custom_call.1} parent=11 // pred_check_branch
          %221 = sbr.rel (%p219) target = $region28
        $region27: #{tpu_custom_call.1} parent=11 // pred_region
          _
        $region28: #{tpu_custom_call.1} parent=11 // pred_fallthru
          _
      $region12: #{tpu_custom_call.1} parent=5 // pred_fallthru
        _
      %p222 = scmp.lt.s32.totalorder %s16, 6
      // Predicated region
      $region29: #{tpu_custom_call.1} parent=5 // pred_check
        %p223 = pneg %p222
      $region30: #{tpu_custom_call.1} parent=5 // pred_check_branch
        %225 = sbr.rel (%p223) target = $region32
      $region31: #{tpu_custom_call.1} parent=5 // pred_region
        // Predicated region
        $region33: #{tpu_custom_call.1} parent=31 // pred_check
          %p226 = pneg %p101
        $region34: #{tpu_custom_call.1} parent=31 // pred_check_branch
          %228 = sbr.rel (%p226) target = $region36
        $region35: #{tpu_custom_call.1} parent=31 // pred_region
          %s229 = smul.u32 2, %s25
          %p230 = scmp.lt.s32.totalorder %s23, 1
          %s231 = scalar_select %p230, %s23, 1
          %p232 = scmp.lt.s32.totalorder %s24, 2
          %s233 = scalar_select %p232, %s24, 2
          %p234 = scmp.lt.s32.totalorder %s229, 1
          %s235 = scalar_select %p234, %s229, 1
          %s236 = smul.addr %s233, 2
          %s237 = sadd.s32 %s235, %s236
          %s238 = smul.addr %s231, 6
          %s239 = sadd.s32 %s237, %s238
          %s240 = smul.addr %s239, 8
          %s241 = scalar_lea.vmem %s2, %s240
          %s242 = smul.u32 2, %s25
        $region36: #{tpu_custom_call.1} parent=31 // pred_fallthru
          _
      $region32: #{tpu_custom_call.1} parent=5 // pred_fallthru
        _
      %p243 = scmp.le.s32.totalorder 1, %s16
      %p244 = scmp.lt.s32.totalorder %s16, 7
      %p245 = pnand %p243, %p244
      %p246 = pneg %p245
      // Predicated region
      $region37: #{tpu_custom_call.1} parent=5 // pred_check
        _
      $region38: #{tpu_custom_call.1} parent=5 // pred_check_branch
        %248 = sbr.rel (%p245) target = $region40
      $region39: #{tpu_custom_call.1} parent=5 // pred_region
        %s249 = ssub.s32 %s16, 1
        // Predicated region
        $region41: #{tpu_custom_call.1} parent=39 // pred_check
          %p250 = pneg %p56
        $region42: #{tpu_custom_call.1} parent=39 // pred_check_branch
          %252 = sbr.rel (%p250) target = $region44
        $region43: #{tpu_custom_call.1} parent=39 // pred_region
          %253 = dma.done [#allocation4], 16
        $region44: #{tpu_custom_call.1} parent=39 // pred_fallthru
          _
        // Predicated region
        $region45: #{tpu_custom_call.1} parent=39 // pred_check
          %p254 = pneg %p77
        $region46: #{tpu_custom_call.1} parent=39 // pred_check_branch
          %256 = sbr.rel (%p254) target = $region48
        $region47: #{tpu_custom_call.1} parent=39 // pred_region
          %257 = dma.done [#allocation6], 16
        $region48: #{tpu_custom_call.1} parent=39 // pred_fallthru
          _
        %258 = sfence
        %p259 = pneg %p56
        %p260 = pneg %p53
        %p261 = pneg %p77
        %p262 = pneg %p74
        %s263 = smul.u32 2, %s28
        %p264 = scmp.lt.s32.totalorder %s26, 1
        %s265 = scalar_select %p264, %s26, 1
        %p266 = scmp.lt.s32.totalorder %s27, 2
        %s267 = scalar_select %p266, %s27, 2
        %p268 = scmp.lt.s32.totalorder %s263, 1
        %s269 = scalar_select %p268, %s263, 1
        %s270 = smul.addr %s267, 2
        %s271 = sadd.s32 %s269, %s270
        %s272 = smul.addr %s265, 6
        %s273 = sadd.s32 %s271, %s272
        %s274 = smul.addr %s273, 8
        %s275 = scalar_lea.vmem %s2, %s274
        %p276 = pneg %p107
        %p277 = pneg %p104
        %p278 = pneg %p128
        %p279 = pneg %p125
        %p280 = pneg %p149
        %p281 = pneg %p146
        %p282 = pneg %p179
        %p283 = pneg %p176
        %s284 = sand.u32 %s166, 1
        %s285 = scalar_lea.sflag [#allocation3], %s284
        %s286 = sand.u32 %s166, 1
        %s287 = smul.addr %s286, 16
        %s288 = scalar_lea.vmem [#allocation7], %s287
        %s289 = smul.u32 2, %s28
        %p290 = scmp.lt.s32.totalorder %s26, 1
        %s291 = scalar_select %p290, %s26, 1
        %p292 = scmp.lt.s32.totalorder %s27, 2
        %s293 = scalar_select %p292, %s27, 2
        %p294 = scmp.lt.s32.totalorder %s289, 1
        %s295 = scalar_select %p294, %s289, 1
        %s296 = smul.addr %s293, 2
        %s297 = sadd.s32 %s295, %s296
        %s298 = smul.addr %s291, 6
        %s299 = sadd.s32 %s297, %s298
        %s300 = smul.addr %s299, 8
        %s301 = scalar_lea.vmem %s2, %s300
        %s302 = smul.u32 2, %s28
        %s303 = smul.u32 4, %s28
        %s305 = sld [smem:[#allocation2 + %s27]]
        %s306 = sld [smem:[#allocation5 + %s27]]
        %v307 = vld [vmem:[%s301] sm:$0xff]
        %v308 = vld [vmem:[%s301 + $0x8] sm:$0xff]
        %v309 = vunpack.c.l.u8.bf16 %v307
        %v310 = vunpack.c.h.u8.bf16 %v307
        %v311 = vunpack.c.l.u8.bf16 %v308
        %v312 = vunpack.c.h.u8.bf16 %v308
        %v313 = vld [vmem:[%s3] sm:$0xf]
        %v314 = vld [vmem:[%s3 + $0x4] sm:$0xf]
        %v315 = vunpack.c.l.bf16 %v313
        %v316 = vunpack.c.l.bf16 %v314
        %v317 = vstv %s305
        %v318 = vmul.f32 %v315, %v317
        %v319 = vmul.f32 %v316, %v317
        %v320 = vpack.c.bf16 %v319, %v318
        %vm321 = vcmask 130048
        %v323 = vsel %vm321, %v309, 0
        %v326 = vsel %vm321, %v310, 0
        %v329 = vsel %vm321, %v311, 0
        %v332 = vsel %vm321, %v312, 0
        %334 = vmatprep.subr.bf16.mxu0 0
        %335 = vmatpush1.bf16.msra.mxu0 %v320
        %336 = vmatprep.subr.bf16.mxu0 0
        %337 = vmatpush1.bf16.msra.mxu0 0
        %338 = vmatprep.subr.bf16.mxu0 0
        %339 = vmatpush1.bf16.msra.mxu0 0
        %340 = vmatprep.subr.bf16.mxu0 0
        %341 = vmatpush1.bf16.msra.mxu0 0
        %342 = vmatprep.subr.bf16.mxu0 0
        %343 = vmatpush1.bf16.msra.mxu0 0
        %344 = vmatprep.subr.bf16.mxu0 0
        %345 = vmatpush1.bf16.msra.mxu0 0
        %346 = vmatprep.subr.bf16.mxu0 0
        %347 = vmatpush1.bf16.msra.mxu0 0
        %348 = vmatprep.subr.bf16.mxu0 0
        %349 = vmatpush1.bf16.msra.mxu0 0
        %350 = vmatprep.subr.bf16.mxu0 0
        %351 = vmatpush1.bf16.msra.mxu0 0
        %352 = vmatprep.subr.bf16.mxu0 0
        %353 = vmatpush1.bf16.msra.mxu0 0
        %354 = vmatprep.subr.bf16.mxu0 0
        %355 = vmatpush1.bf16.msra.mxu0 0
        %356 = vmatprep.subr.bf16.mxu0 0
        %357 = vmatpush1.bf16.msra.mxu0 0
        %358 = vmatprep.subr.bf16.mxu0 0
        %359 = vmatpush1.bf16.msra.mxu0 0
        %360 = vmatprep.subr.bf16.mxu0 0
        %361 = vmatpush1.bf16.msra.mxu0 0
        %362 = vmatprep.subr.bf16.mxu0 0
        %363 = vmatpush1.bf16.msra.mxu0 0
        %364 = vmatprep.subr.bf16.mxu0 0
        %365 = vmatpush1.bf16.msra.mxu0 0
        %366 = vmatprep.mubr.bf16.mxu0 0
        %367 = vmatmul.mubr.bf16.gmra.mrb[0].mxu0 %v323
        %v368 = vpop.f32.mrb[0].mxu0
        %v369 = vadd.f32 0.0, %v368
        %v370 = vpop.f32.mrb[0].mxu0
        %v371 = vpop.f32.mrb[0].mxu0
        %v372 = vadd.f32 0.0, %v371
        %v373 = vpop.f32.mrb[0].mxu0
        %374 = vmatprep.mubr.bf16.mxu0 0
        %375 = vmatmul.mubr.bf16.gmra.mrb[0].mxu0 %v326
        %v376 = vpop.f32.mrb[0].mxu0
        %v377 = vadd.f32 0.0, %v376
        %v378 = vpop.f32.mrb[0].mxu0
        %v379 = vpop.f32.mrb[0].mxu0
        %v380 = vadd.f32 0.0, %v379
        %v381 = vpop.f32.mrb[0].mxu0
        %382 = vmatprep.mubr.bf16.mxu0 0
        %383 = vmatmul.mubr.bf16.gmra.mrb[0].mxu0 %v329
        %v384 = vpop.f32.mrb[0].mxu0
        %v385 = vadd.f32 0.0, %v384
        %v386 = vpop.f32.mrb[0].mxu0
        %v387 = vpop.f32.mrb[0].mxu0
        %v388 = vadd.f32 0.0, %v387
        %v389 = vpop.f32.mrb[0].mxu0
        %390 = vmatprep.mubr.bf16.mxu0 0
        %391 = vmatmul.mubr.bf16.gmra.mrb[0].mxu0 %v332
        %v392 = vpop.f32.mrb[0].mxu0
        %v393 = vadd.f32 0.0, %v392
        %v394 = vpop.f32.mrb[0].mxu0
        %v395 = vpop.f32.mrb[0].mxu0
        %v396 = vadd.f32 0.0, %v395
        %v397 = vpop.f32.mrb[0].mxu0
        %398 = vdwg.mxu0
        %v399 = vpack.c.bf16 %v372, %v369
        %v400 = vpack.c.bf16 %v380, %v377
        %v401 = vpack.c.bf16 %v388, %v385
        %v402 = vpack.c.bf16 %v396, %v393
        %v403 = vld [vmem:[%s4] sm:$0xf]
        %v404 = vld [vmem:[%s4 + $0x4] sm:$0xf]
        %v405 = vld [vmem:[%s4 + $0x8] sm:$0xf]
        %v406 = vld [vmem:[%s4 + $0xc] sm:$0xf]
        %v407 = vstv %s306
        %v409 = vsel %vm321, %v403, 0
        %411 = vmatprep.subr.bf16.mxu0 0
        %412 = vmatpush1.bf16.msra.mxu0 %v399
        %413 = vmatprep.subr.bf16.mxu0 0
        %414 = vmatpush1.bf16.msra.mxu0 0
        %415 = vmatprep.subr.bf16.mxu0 0
        %416 = vmatpush1.bf16.msra.mxu0 0
        %417 = vmatprep.subr.bf16.mxu0 0
        %418 = vmatpush1.bf16.msra.mxu0 0
        %419 = vmatprep.subr.bf16.mxu0 0
        %420 = vmatpush1.bf16.msra.mxu0 0
        %421 = vmatprep.subr.bf16.mxu0 0
        %422 = vmatpush1.bf16.msra.mxu0 0
        %423 = vmatprep.subr.bf16.mxu0 0
        %424 = vmatpush1.bf16.msra.mxu0 0
        %425 = vmatprep.subr.bf16.mxu0 0
        %426 = vmatpush1.bf16.msra.mxu0 0
        %427 = vmatprep.subr.bf16.mxu0 0
        %428 = vmatpush1.bf16.msra.mxu0 0
        %429 = vmatprep.subr.bf16.mxu0 0
        %430 = vmatpush1.bf16.msra.mxu0 0
        %431 = vmatprep.subr.bf16.mxu0 0
        %432 = vmatpush1.bf16.msra.mxu0 0
        %433 = vmatprep.subr.bf16.mxu0 0
        %434 = vmatpush1.bf16.msra.mxu0 0
        %435 = vmatprep.subr.bf16.mxu0 0
        %436 = vmatpush1.bf16.msra.mxu0 0
        %437 = vmatprep.subr.bf16.mxu0 0
        %438 = vmatpush1.bf16.msra.mxu0 0
        %439 = vmatprep.subr.bf16.mxu0 0
        %440 = vmatpush1.bf16.msra.mxu0 0
        %441 = vmatprep.subr.bf16.mxu0 0
        %442 = vmatpush1.bf16.msra.mxu0 0
        %443 = vmatprep.mubr.bf16.mxu0 0
        %444 = vmatmul.mubr.bf16.gmra.mrb[0].mxu0 %v409
        %v445 = vpop.f32.mrb[0].mxu0
        %v446 = vadd.f32 %v407, %v445
        %v447 = vpop.f32.mrb[0].mxu0
        %v448 = vpop.f32.mrb[0].mxu0
        %v449 = vpop.f32.mrb[0].mxu0
        %450 = vdwg.mxu0
        %v452 = vsel %vm321, %v404, 0
        %454 = vmatprep.subr.bf16.mxu0 0
        %455 = vmatpush1.bf16.msra.mxu0 %v400
        %456 = vmatprep.subr.bf16.mxu0 0
        %457 = vmatpush1.bf16.msra.mxu0 0
        %458 = vmatprep.subr.bf16.mxu0 0
        %459 = vmatpush1.bf16.msra.mxu0 0
        %460 = vmatprep.subr.bf16.mxu0 0
        %461 = vmatpush1.bf16.msra.mxu0 0
        %462 = vmatprep.subr.bf16.mxu0 0
        %463 = vmatpush1.bf16.msra.mxu0 0
        %464 = vmatprep.subr.bf16.mxu0 0
        %465 = vmatpush1.bf16.msra.mxu0 0
        %466 = vmatprep.subr.bf16.mxu0 0
        %467 = vmatpush1.bf16.msra.mxu0 0
        %468 = vmatprep.subr.bf16.mxu0 0
        %469 = vmatpush1.bf16.msra.mxu0 0
        %470 = vmatprep.subr.bf16.mxu0 0
        %471 = vmatpush1.bf16.msra.mxu0 0
        %472 = vmatprep.subr.bf16.mxu0 0
        %473 = vmatpush1.bf16.msra.mxu0 0
        %474 = vmatprep.subr.bf16.mxu0 0
        %475 = vmatpush1.bf16.msra.mxu0 0
        %476 = vmatprep.subr.bf16.mxu0 0
        %477 = vmatpush1.bf16.msra.mxu0 0
        %478 = vmatprep.subr.bf16.mxu0 0
        %479 = vmatpush1.bf16.msra.mxu0 0
        %480 = vmatprep.subr.bf16.mxu0 0
        %481 = vmatpush1.bf16.msra.mxu0 0
        %482 = vmatprep.subr.bf16.mxu0 0
        %483 = vmatpush1.bf16.msra.mxu0 0
        %484 = vmatprep.subr.bf16.mxu0 0
        %485 = vmatpush1.bf16.msra.mxu0 0
        %486 = vmatprep.mubr.bf16.mxu0 0
        %487 = vmatmul.mubr.bf16.gmra.mrb[0].mxu0 %v452
        %v488 = vpop.f32.mrb[0].mxu0
        %v489 = vadd.f32 %v407, %v488
        %v490 = vpop.f32.mrb[0].mxu0
        %v491 = vpop.f32.mrb[0].mxu0
        %v492 = vpop.f32.mrb[0].mxu0
        %493 = vdwg.mxu0
        %v495 = vsel %vm321, %v405, 0
        %497 = vmatprep.subr.bf16.mxu0 0
        %498 = vmatpush1.bf16.msra.mxu0 %v401
        %499 = vmatprep.subr.bf16.mxu0 0
        %500 = vmatpush1.bf16.msra.mxu0 0
        %501 = vmatprep.subr.bf16.mxu0 0
        %502 = vmatpush1.bf16.msra.mxu0 0
        %503 = vmatprep.subr.bf16.mxu0 0
        %504 = vmatpush1.bf16.msra.mxu0 0
        %505 = vmatprep.subr.bf16.mxu0 0
        %506 = vmatpush1.bf16.msra.mxu0 0
        %507 = vmatprep.subr.bf16.mxu0 0
        %508 = vmatpush1.bf16.msra.mxu0 0
        %509 = vmatprep.subr.bf16.mxu0 0
        %510 = vmatpush1.bf16.msra.mxu0 0
        %511 = vmatprep.subr.bf16.mxu0 0
        %512 = vmatpush1.bf16.msra.mxu0 0
        %513 = vmatprep.subr.bf16.mxu0 0
        %514 = vmatpush1.bf16.msra.mxu0 0
        %515 = vmatprep.subr.bf16.mxu0 0
        %516 = vmatpush1.bf16.msra.mxu0 0
        %517 = vmatprep.subr.bf16.mxu0 0
        %518 = vmatpush1.bf16.msra.mxu0 0
        %519 = vmatprep.subr.bf16.mxu0 0
        %520 = vmatpush1.bf16.msra.mxu0 0
        %521 = vmatprep.subr.bf16.mxu0 0
        %522 = vmatpush1.bf16.msra.mxu0 0
        %523 = vmatprep.subr.bf16.mxu0 0
        %524 = vmatpush1.bf16.msra.mxu0 0
        %525 = vmatprep.subr.bf16.mxu0 0
        %526 = vmatpush1.bf16.msra.mxu0 0
        %527 = vmatprep.subr.bf16.mxu0 0
        %528 = vmatpush1.bf16.msra.mxu0 0
        %529 = vmatprep.mubr.bf16.mxu0 0
        %530 = vmatmul.mubr.bf16.gmra.mrb[0].mxu0 %v495
        %v531 = vpop.f32.mrb[0].mxu0
        %v532 = vadd.f32 %v407, %v531
        %v533 = vpop.f32.mrb[0].mxu0
        %v534 = vpop.f32.mrb[0].mxu0
        %v535 = vpop.f32.mrb[0].mxu0
        %536 = vdwg.mxu0
        %v538 = vsel %vm321, %v406, 0
        %540 = vmatprep.subr.bf16.mxu0 0
        %541 = vmatpush1.bf16.msra.mxu0 %v402
        %542 = vmatprep.subr.bf16.mxu0 0
        %543 = vmatpush1.bf16.msra.mxu0 0
        %544 = vmatprep.subr.bf16.mxu0 0
        %545 = vmatpush1.bf16.msra.mxu0 0
        %546 = vmatprep.subr.bf16.mxu0 0
        %547 = vmatpush1.bf16.msra.mxu0 0
        %548 = vmatprep.subr.bf16.mxu0 0
        %549 = vmatpush1.bf16.msra.mxu0 0
        %550 = vmatprep.subr.bf16.mxu0 0
        %551 = vmatpush1.bf16.msra.mxu0 0
        %552 = vmatprep.subr.bf16.mxu0 0
        %553 = vmatpush1.bf16.msra.mxu0 0
        %554 = vmatprep.subr.bf16.mxu0 0
        %555 = vmatpush1.bf16.msra.mxu0 0
        %556 = vmatprep.subr.bf16.mxu0 0
        %557 = vmatpush1.bf16.msra.mxu0 0
        %558 = vmatprep.subr.bf16.mxu0 0
        %559 = vmatpush1.bf16.msra.mxu0 0
        %560 = vmatprep.subr.bf16.mxu0 0
        %561 = vmatpush1.bf16.msra.mxu0 0
        %562 = vmatprep.subr.bf16.mxu0 0
        %563 = vmatpush1.bf16.msra.mxu0 0
        %564 = vmatprep.subr.bf16.mxu0 0
        %565 = vmatpush1.bf16.msra.mxu0 0
        %566 = vmatprep.subr.bf16.mxu0 0
        %567 = vmatpush1.bf16.msra.mxu0 0
        %568 = vmatprep.subr.bf16.mxu0 0
        %569 = vmatpush1.bf16.msra.mxu0 0
        %570 = vmatprep.subr.bf16.mxu0 0
        %571 = vmatpush1.bf16.msra.mxu0 0
        %572 = vmatprep.mubr.bf16.mxu0 0
        %573 = vmatmul.mubr.bf16.gmra.mrb[0].mxu0 %v538
        %v574 = vpop.f32.mrb[0].mxu0
        %v575 = vadd.f32 %v407, %v574
        %v576 = vpop.f32.mrb[0].mxu0
        %v577 = vpop.f32.mrb[0].mxu0
        %v578 = vpop.f32.mrb[0].mxu0
        %579 = vdwg.mxu0
        %v580 = vpack.c.bf16 %v446, %v446
        %v581 = vpack.c.bf16 %v489, %v489
        %v582 = vpack.c.bf16 %v532, %v532
        %v583 = vpack.c.bf16 %v575, %v575
        %vm584 = vcmask 60416
        %585 = vst.msk [vmem:[%s288] sm:$0xf] %vm584, %v580
        %586 = vst.msk [vmem:[%s288 + $0x4] sm:$0xf] %vm584, %v581
        %587 = vst.msk [vmem:[%s288 + $0x8] sm:$0xf] %vm584, %v582
        %588 = vst.msk [vmem:[%s288 + $0xc] sm:$0xf] %vm584, %v583
        %s589 = sand.u32 %s166, 1
        %s590 = scalar_lea.sflag [#allocation3], %s589
        %s591 = sand.u32 %s166, 1
        %s592 = smul.addr %s591, 16
        %s593 = scalar_lea.vmem [#allocation7], %s592
        // Predicated region
        $region49: #{tpu_custom_call.1} parent=39 // pred_check
          %p594 = pneg %p176
        $region50: #{tpu_custom_call.1} parent=39 // pred_check_branch
          %596 = sbr.rel (%p594) target = $region52
        $region51: #{tpu_custom_call.1} parent=39 // pred_region
          %s597 = smul.u32 4, %s28
          %s599 = ssub.s32 256, 256
          %600 = vsyncadd %s590, %s599
          %s601 = smul.addr %s27, 4
          %s602 = sadd.s32 %s597, %s601
          %s603 = smul.addr %s26, 12
          %s604 = sadd.s32 %s602, %s603
          %s605 = smul.addr %s604, 64
          %s606 = scalar_lea.hbm %s5, %s605
          %s607 = sshll.u32 %s593, 4
          %s608 = int_to_ptr.vmem [resolvable:$true] %s607
          %613 = dma.vmem_to_hbm [thread:$0]  %s608, 256, %s606, %s590, 64, 64, 4
        $region52: #{tpu_custom_call.1} parent=39 // pred_fallthru
          _
      $region40: #{tpu_custom_call.1} parent=5 // pred_fallthru
        _
      %p614 = scmp.le.s32.totalorder 2, %s16
      // Predicated region
      $region53: #{tpu_custom_call.1} parent=5 // pred_check
        %p615 = pneg %p614
      $region54: #{tpu_custom_call.1} parent=5 // pred_check_branch
        %617 = sbr.rel (%p615) target = $region56
      $region55: #{tpu_custom_call.1} parent=5 // pred_region
        %s618 = ssub.s32 %s16, 2
        // Predicated region
        $region57: #{tpu_custom_call.1} parent=55 // pred_check
          %p619 = pneg %p182
        $region58: #{tpu_custom_call.1} parent=55 // pred_check_branch
          %621 = sbr.rel (%p619) target = $region60
        $region59: #{tpu_custom_call.1} parent=55 // pred_region
          %s622 = sand.u32 %s167, 1
          %s623 = scalar_lea.sflag [#allocation3], %s622
          %s624 = sand.u32 %s167, 1
          %s625 = smul.addr %s624, 16
          %s626 = scalar_lea.vmem [#allocation7], %s625
          %627 = dma.done %s623, 256
        $region60: #{tpu_custom_call.1} parent=55 // pred_fallthru
          _
      $region56: #{tpu_custom_call.1} parent=5 // pred_fallthru
        _
    $region6: #{tpu_custom_call.1} parent=1 // loop_footer
      %s20 = sadd.s32 1, %s16
    $region7: #{tpu_custom_call.1} parent=1 // loop_footer_branch
      %15 = sbr.rel target = $region3
    $region8: #{tpu_custom_call.1} parent=1 // loop_exit
      _
    %628 = vsyncpa [#allocation3], 1
    %s629 = scalar_lea.sflag [#allocation3], 1
    %630 = vsyncpa %s629, 1
    %631 = vsyncpa [#allocation4], 1
    %s632 = scalar_lea.sflag [#allocation4], 1
    %633 = vsyncpa %s632, 1
    %634 = vsyncpa [#allocation6], 1

</llo_original>
